<compile_context>
chip_gen: v7x
topology: tpu7x:2x2x1
jax: 0.10.0
libtpu: 0.0.40
codegen_flags: <defaults>
</compile_context>

<pallas_src>
import jax
import jax.numpy as jnp
from jax.experimental import pallas as pl
from jax.experimental.pallas import tpu as pltpu


def _spatial_attention_kernel(c1_ref, c2_ref, w1a_ref, w1b_ref, w23_ref, o_ref):
    # c1_ref, c2_ref: (C, TP) VMEM    w1a_ref, w1b_ref: (C, C) VMEM
    # w23_ref: (2, 2) SMEM (row 0 = conv1x1_2, row 1 = conv1x1_3)
    # o_ref: (2C, TP) VMEM
    C = c1_ref.shape[0]
    c1 = c1_ref[...].astype(jnp.float32)
    c2 = c2_ref[...].astype(jnp.float32)

    # conv1x1_1 on cat([c1, c2], channel) == W1a @ c1 + W1b @ c2  (no sublane concat)
    h = (jnp.dot(w1a_ref[...].astype(jnp.float32), c1,
                 preferred_element_type=jnp.float32)
         + jnp.dot(w1b_ref[...].astype(jnp.float32), c2,
                   preferred_element_type=jnp.float32))            # (C, TP)

    # channel-wise mean / max (sublane reductions)
    avg = jnp.mean(h, axis=0, keepdims=True)                       # (1, TP)
    mx = jnp.max(h, axis=0, keepdims=True)                         # (1, TP)

    # conv1x1_2 / conv1x1_3 (Conv3d(2 -> 1)) as scalar-broadcast FMAs + EUP sigmoid
    s2 = jax.nn.sigmoid(w23_ref[0, 0] * avg + w23_ref[0, 1] * mx)  # gate for c1
    s3 = jax.nn.sigmoid(w23_ref[1, 0] * avg + w23_ref[1, 1] * mx)  # gate for c2

    # write halves directly (no output concat temporary)
    o_ref[0:C, :] = (c1 * s2).astype(o_ref.dtype)
    o_ref[C:2 * C, :] = (c2 * s3).astype(o_ref.dtype)


def _pick_tile_p(dhw, requested):
    """Largest lane tile <= requested that evenly divides dhw (multiple of 128),
    falling back to the full extent (always legal as a full-dim block)."""
    if dhw <= requested:
        return dhw
    t = (requested // 128) * 128
    while t >= 128:
        if dhw % t == 0:
            return t
        t -= 128
    return dhw


def spatial_attention(c1, c2, w1, w23, *, tile_p=2048):
    """c1, c2: (N, C, D, H, W).  w1: (C, 2C) conv1x1_1 weight.  w23: (2, 2)
    (row 0 = conv1x1_2 weight, row 1 = conv1x1_3 weight)."""
    N, C, D, H, W = c1.shape
    DHW = D * H * W
    tp = _pick_tile_p(DHW, tile_p)

    # Free contiguous reshapes — no HBM transpose round-trips.
    c1f = c1.reshape(N, C, DHW)
    c2f = c2.reshape(N, C, DHW)
    # Pre-split conv1x1_1 weight so the kernel never concatenates along sublanes.
    w1a = w1[:, :C]
    w1b = w1[:, C:]
    w23f = w23.astype(jnp.float32)

    # Memory-bound op: ~16*C*P bytes of HBM traffic, tiny matmul flops.
    P = N * DHW
    cost = pl.CostEstimate(
        flops=2 * (2 * C) * C * P + 8 * C * P,
        transcendentals=2 * P,
        bytes_accessed=16 * C * P,
    )

    out_flat = pl.pallas_call(
        _spatial_attention_kernel,
        out_shape=jax.ShapeDtypeStruct((N, 2 * C, DHW), c1.dtype),
        grid_spec=pltpu.PrefetchScalarGridSpec(
            num_scalar_prefetch=0,
            grid=(N, DHW // tp),
            in_specs=[
                pl.BlockSpec((None, C, tp), lambda n, i: (n, 0, i)),   # c1 tile
                pl.BlockSpec((None, C, tp), lambda n, i: (n, 0, i)),   # c2 tile
                pl.BlockSpec((C, C), lambda n, i: (0, 0)),             # W1a (full)
                pl.BlockSpec((C, C), lambda n, i: (0, 0)),             # W1b (full)
                pl.BlockSpec(memory_space=pltpu.MemorySpace.SMEM),     # w23 scalars
            ],
            out_specs=pl.BlockSpec((None, 2 * C, tp), lambda n, i: (n, 0, i)),
        ),
        compiler_params=pltpu.CompilerParams(
            dimension_semantics=("parallel", "parallel")),
        cost_estimate=cost,
    )(c1f, c2f, w1a, w1b, w23f)

    # (N, 2C, DHW) -> (N, 2C, D, H, W): free reshape, no transpose.
    return out_flat.reshape(N, 2 * C, D, H, W)


def _reference(c1, c2, w1, w23):
    cat = jnp.concatenate([c1, c2], axis=1)
    h = jnp.einsum('oc,ncdhw->nodhw', w1, cat)
    avg = jnp.mean(h, axis=1, keepdims=True)
    mx = jnp.max(h, axis=1, keepdims=True)
    am = jnp.concatenate([avg, mx], axis=1)
    s = jax.nn.sigmoid(jnp.einsum('oc,ncdhw->nodhw', w23, am))
    return jnp.concatenate([c1 * s[:, 0:1], c2 * s[:, 1:2]], axis=1)


if __name__ == "__main__":
    out_ch = 4
    N, D, H, W = 2, 4, 8, 8          # DHW = 256 (fits in one lane-dense tile)

    key = jax.random.PRNGKey(0)
    k1, k2, k3, k4, k5 = jax.random.split(key, 5)
    c1 = jax.random.normal(k1, (N, out_ch, D, H, W), dtype=jnp.float32)
    c2 = jax.random.normal(k2, (N, out_ch, D, H, W), dtype=jnp.float32)

    # Conv3d 1x1x1 weights with kernel dims squeezed, no bias.
    w1 = jax.random.normal(k3, (out_ch, 2 * out_ch), dtype=jnp.float32) * 0.1   # conv1x1_1
    w2 = jax.random.normal(k4, (1, 2), dtype=jnp.float32) * 0.1                 # conv1x1_2
    w3 = jax.random.normal(k5, (1, 2), dtype=jnp.float32) * 0.1                 # conv1x1_3
    w23 = jnp.concatenate([w2, w3], axis=0)                                     # (2, 2)

    out = spatial_attention(c1, c2, w1, w23)
    jax.block_until_ready(out)

    ref = _reference(c1, c2, w1, w23)
    assert out.shape == (N, 2 * out_ch, D, H, W)
    assert jnp.allclose(out, ref, atol=1e-5, rtol=1e-5)
    print("KERNEL_OK")
</pallas_src>

<mosaic_0001>
module attributes {stable_mosaic.version = 11 : i64} {
  func.func @_spatial_attention_kernel(%arg0: i32, %arg1: i32, %arg2: memref<1x4x256xf32, #tpu.memory_space<vmem>>, %arg3: memref<1x4x256xf32, #tpu.memory_space<vmem>>, %arg4: memref<4x4xf32, #tpu.memory_space<vmem>>, %arg5: memref<4x4xf32, #tpu.memory_space<vmem>>, %arg6: memref<2x2xf32, #tpu.memory_space<smem>>, %arg7: memref<1x8x256xf32, #tpu.memory_space<vmem>>) attributes {dimension_semantics = [#tpu.dimension_semantics<parallel>, #tpu.dimension_semantics<parallel>], iteration_bounds = array<i64: 2, 1>, scalar_prefetch = 0 : i64, scratch_operands = 0 : i64, tpu.core_type = #tpu.core_type<tc>, window_params = [{transform_indices = @transform_0, window_bounds = array<i64: 1, 4, 256>}, {transform_indices = @transform_1, window_bounds = array<i64: 1, 4, 256>}, {pipeline_mode = #tpu.pipeline_mode<synchronous>, transform_indices = @transform_2, window_bounds = array<i64: 4, 4>}, {pipeline_mode = #tpu.pipeline_mode<synchronous>, transform_indices = @transform_3, window_bounds = array<i64: 4, 4>}, {transform_indices = @transform_4, window_bounds = array<i64: 2, 2>}, {transform_indices = @transform_5, window_bounds = array<i64: 1, 8, 256>}]} {
    %c0 = arith.constant 0 : index
    %c0_0 = arith.constant 0 : index
    %c0_1 = arith.constant 0 : index
    %0 = vector.load %arg2[%c0, %c0_0, %c0_1] : memref<1x4x256xf32, #tpu.memory_space<vmem>>, vector<1x4x256xf32>
    %1 = vector.shape_cast %0 : vector<1x4x256xf32> to vector<4x256xf32>
    %c0_2 = arith.constant 0 : index
    %c0_3 = arith.constant 0 : index
    %c0_4 = arith.constant 0 : index
    %2 = vector.load %arg3[%c0_2, %c0_3, %c0_4] : memref<1x4x256xf32, #tpu.memory_space<vmem>>, vector<1x4x256xf32>
    %3 = vector.shape_cast %2 : vector<1x4x256xf32> to vector<4x256xf32>
    %c0_5 = arith.constant 0 : index
    %c0_6 = arith.constant 0 : index
    %4 = vector.load %arg4[%c0_5, %c0_6] : memref<4x4xf32, #tpu.memory_space<vmem>>, vector<4x4xf32>
    %cst = arith.constant dense<0.000000e+00> : vector<4x256xf32>
    %5 = tpu.matmul %4, %1, %cst {dimension_numbers = #tpu.dot_dimension_numbers<[1], [0], [0], [1], [0, 0, 1, 1], [], []>} : vector<4x4xf32>, vector<4x256xf32>, vector<4x256xf32> -> vector<4x256xf32>
    %c0_7 = arith.constant 0 : index
    %c0_8 = arith.constant 0 : index
    %6 = vector.load %arg5[%c0_7, %c0_8] : memref<4x4xf32, #tpu.memory_space<vmem>>, vector<4x4xf32>
    %cst_9 = arith.constant dense<0.000000e+00> : vector<4x256xf32>
    %7 = tpu.matmul %6, %3, %cst_9 {dimension_numbers = #tpu.dot_dimension_numbers<[1], [0], [0], [1], [0, 0, 1, 1], [], []>} : vector<4x4xf32>, vector<4x256xf32>, vector<4x256xf32> -> vector<4x256xf32>
    %8 = arith.addf %5, %7 : vector<4x256xf32>
    %cst_10 = arith.constant dense<0.000000e+00> : vector<256xf32>
    %9 = vector.multi_reduction <add>, %8, %cst_10 [0] : vector<4x256xf32> to vector<256xf32>
    %10 = vector.shape_cast %9 : vector<256xf32> to vector<1x256xf32>
    %cst_11 = arith.constant 4.000000e+00 : f32
    %11 = vector.broadcast %cst_11 : f32 to vector<1x256xf32>
    %12 = arith.divf %10, %11 : vector<1x256xf32>
    %cst_12 = arith.constant dense<0xFF800000> : vector<256xf32>
    %13 = vector.multi_reduction <maximumf>, %8, %cst_12 [0] : vector<4x256xf32> to vector<256xf32>
    %14 = vector.shape_cast %13 : vector<256xf32> to vector<1x256xf32>
    %c0_13 = arith.constant 0 : index
    %c0_14 = arith.constant 0 : index
    %15 = memref.load %arg6[%c0_13, %c0_14] : memref<2x2xf32, #tpu.memory_space<smem>>
    %16 = vector.broadcast %15 : f32 to vector<1x256xf32>
    %17 = arith.mulf %16, %12 : vector<1x256xf32>
    %c0_15 = arith.constant 0 : index
    %c1 = arith.constant 1 : index
    %18 = memref.load %arg6[%c0_15, %c1] : memref<2x2xf32, #tpu.memory_space<smem>>
    %19 = vector.broadcast %18 : f32 to vector<1x256xf32>
    %20 = arith.mulf %19, %14 : vector<1x256xf32>
    %21 = arith.addf %17, %20 : vector<1x256xf32>
    %22 = arith.negf %21 : vector<1x256xf32>
    %23 = math.exp %22 : vector<1x256xf32>
    %cst_16 = arith.constant 1.000000e+00 : f32
    %24 = vector.broadcast %cst_16 : f32 to vector<1x256xf32>
    %25 = arith.addf %24, %23 : vector<1x256xf32>
    %26 = arith.divf %24, %25 : vector<1x256xf32>
    %c1_17 = arith.constant 1 : index
    %c0_18 = arith.constant 0 : index
    %27 = memref.load %arg6[%c1_17, %c0_18] : memref<2x2xf32, #tpu.memory_space<smem>>
    %28 = vector.broadcast %27 : f32 to vector<1x256xf32>
    %29 = arith.mulf %28, %12 : vector<1x256xf32>
    %c1_19 = arith.constant 1 : index
    %c1_20 = arith.constant 1 : index
    %30 = memref.load %arg6[%c1_19, %c1_20] : memref<2x2xf32, #tpu.memory_space<smem>>
    %31 = vector.broadcast %30 : f32 to vector<1x256xf32>
    %32 = arith.mulf %31, %14 : vector<1x256xf32>
    %33 = arith.addf %29, %32 : vector<1x256xf32>
    %34 = arith.negf %33 : vector<1x256xf32>
    %35 = math.exp %34 : vector<1x256xf32>
    %cst_21 = arith.constant 1.000000e+00 : f32
    %36 = vector.broadcast %cst_21 : f32 to vector<1x256xf32>
    %37 = arith.addf %36, %35 : vector<1x256xf32>
    %38 = arith.divf %36, %37 : vector<1x256xf32>
    %39 = vector.broadcast %26 : vector<1x256xf32> to vector<4x256xf32>
    %40 = arith.mulf %1, %39 : vector<4x256xf32>
    %c0_22 = arith.constant 0 : index
    %c0_23 = arith.constant 0 : index
    %c0_24 = arith.constant 0 : index
    %41 = vector.load %arg7[%c0_22, %c0_23, %c0_24] : memref<1x8x256xf32, #tpu.memory_space<vmem>>, vector<1x4x256xf32>
    %42 = vector.shape_cast %41 : vector<1x4x256xf32> to vector<4x256xf32>
    %43 = vector.shape_cast %40 : vector<4x256xf32> to vector<1x4x256xf32>
    tpu.vector_store %arg7[%c0_22, %c0_23, %c0_24], %43 {strides = array<i32>} : memref<1x8x256xf32, #tpu.memory_space<vmem>>, vector<1x4x256xf32>,
    %44 = vector.broadcast %38 : vector<1x256xf32> to vector<4x256xf32>
    %45 = arith.mulf %3, %44 : vector<4x256xf32>
    %c0_25 = arith.constant 0 : index
    %c4 = arith.constant 4 : index
    %c0_26 = arith.constant 0 : index
    %46 = vector.load %arg7[%c0_25, %c4, %c0_26] : memref<1x8x256xf32, #tpu.memory_space<vmem>>, vector<1x4x256xf32>
    %47 = vector.shape_cast %46 : vector<1x4x256xf32> to vector<4x256xf32>
    %48 = vector.shape_cast %45 : vector<4x256xf32> to vector<1x4x256xf32>
    tpu.vector_store %arg7[%c0_25, %c4, %c0_26], %48 {strides = array<i32>} : memref<1x8x256xf32, #tpu.memory_space<vmem>>, vector<1x4x256xf32>,
    return
  }
  func.func @transform_0(%arg0: i32, %arg1: i32) -> (i32, i32, i32) {
    %c0_i32 = arith.constant 0 : i32
    %c0_i32_0 = arith.constant 0 : i32
    return %arg0, %c0_i32, %arg1 : i32, i32, i32
  }
  func.func @transform_1(%arg0: i32, %arg1: i32) -> (i32, i32, i32) {
    %c0_i32 = arith.constant 0 : i32
    %c0_i32_0 = arith.constant 0 : i32
    return %arg0, %c0_i32, %arg1 : i32, i32, i32
  }
  func.func @transform_2(%arg0: i32, %arg1: i32) -> (i32, i32) {
    %c0_i32 = arith.constant 0 : i32
    %c0_i32_0 = arith.constant 0 : i32
    %c0_i32_1 = arith.constant 0 : i32
    return %c0_i32, %c0_i32_0 : i32, i32
  }
  func.func @transform_3(%arg0: i32, %arg1: i32) -> (i32, i32) {
    %c0_i32 = arith.constant 0 : i32
    %c0_i32_0 = arith.constant 0 : i32
    %c0_i32_1 = arith.constant 0 : i32
    return %c0_i32, %c0_i32_0 : i32, i32
  }
  func.func @transform_4(%arg0: i32, %arg1: i32) -> (i32, i32) {
    %c0_i32 = arith.constant 0 : i32
    %c0_i32_0 = arith.constant 0 : i32
    %c0_i32_1 = arith.constant 0 : i32
    return %c0_i32, %c0_i32_0 : i32, i32
  }
  func.func @transform_5(%arg0: i32, %arg1: i32) -> (i32, i32, i32) {
    %c0_i32 = arith.constant 0 : i32
    %c0_i32_0 = arith.constant 0 : i32
    return %arg0, %c0_i32, %arg1 : i32, i32, i32
  }
}

</mosaic_0001>

<llo_original>
// kernel: tpu_custom_call.1
$region0: #{tpu_custom_call.1}
  #allocation0 [shape = 'u32[]', space=smem, size = 0x4, offset = 0x4, fixed_abs, tag = 'smem constant byte address 0x4 - core index']
  #allocation1 [shape = 'u32[144,128]{1,0:T(1,128)}', space=vmem, size = 0x12000, scoped, tag = 'internal scratch']
  %s0 = inlined_call_operand.hbm [shape: f32[2,4,256], index: 0, kind: input, shape index: {}]
  %s1 = inlined_call_operand.hbm [shape: f32[2,4,256], index: 1, kind: input, shape index: {}]
  %s2 = inlined_call_operand.vmem [shape: f32[4,4], index: 2, kind: input, shape index: {}]
  %s3 = inlined_call_operand.vmem [shape: f32[4,4], index: 3, kind: input, shape index: {}]
  %s4 = inlined_call_operand.vmem [shape: f32[2,2], index: 4, kind: input, shape index: {}]
  %s5 = inlined_call_operand.hbm [shape: f32[2,8,256], index: 5, kind: output, shape index: {}]
  %s6 = sld [smem:[#allocation0]]
  $region65: #{tpu_custom_call.1} parent=0
    _
  %s8 = ssub.s32 1, %s6
  %s9 = scalar_select 0, %s8, %s6
  $region1: #{tpu_custom_call.1} parent=0
    #allocation2 [shape = 'u8[8192]{0}', space=vmem, size = 0x2000, scoped, tag = 'input window, operand 0']
    #allocation3 [shape = 's32[2]{0}', space=sflag, size = 0x8, scoped, tag = 'scoped memory for tpu_custom_call.1']
    #allocation4 [shape = 's32[2]{0}', space=sflag, size = 0x8, scoped, tag = 'scoped memory for tpu_custom_call.1']
    #allocation5 [shape = 's32[2]{0}', space=sflag, size = 0x8, scoped, tag = 'scoped memory for tpu_custom_call.1']
    #allocation6 [shape = 'u8[8192]{0}', space=vmem, size = 0x2000, scoped, tag = 'input window, operand 1']
    #allocation7 [shape = 's32[2]{0}', space=sflag, size = 0x8, scoped, tag = 'scoped memory for tpu_custom_call.1']
    #allocation8 [shape = 'u8[1024]{0}', space=smem, size = 0x400, scoped, tag = 'input window, operand 4, single buffered']
    #allocation9 [shape = 'u8[16384]{0}', space=vmem, size = 0x4000, scoped, tag = 'output window, operand 0']
    %10 = vsyncpa [#allocation3], 0
    %s11 = scalar_lea.sflag [#allocation3], 1
    %12 = vsyncpa %s11, 0
    %13 = vsyncpa [#allocation7], 0
    %s14 = scalar_lea.sflag [#allocation7], 1
    %15 = vsyncpa %s14, 0
    %16 = vsyncpa [#allocation5], 0
    %17 = vsyncpa [#allocation4], 0
    %s18 = scalar_lea.sflag [#allocation4], 1
    %19 = vsyncpa %s18, 0
    loop: start=0, step=1, limit=4
    $region2: #{tpu_custom_call.1} parent=1 // loop_pre_header
      _
    $region3: #{tpu_custom_call.1} parent=1 // loop_header
      %s21 = sphi 0, %s25
      %p22 = scmp.ge.s32.totalorder %s21, 4
      %s28 = sphi 0, %s40
      %s29 = sphi 0, %s36
      %s30 = sphi 0, %s28
      %s31 = sphi 0, %s29
      %s32 = sphi 0, %s30
      %s33 = sphi 0, %s31
      %s45 = sphi 0, %s47
      %s48 = sphi 0, %s45
      %s49 = sphi 0, %s48
      %s65 = sphi 0, %s49
      %s73 = sphi 0, %s75
      %s76 = sphi 0, %s73
      %s77 = sphi 0, %s76
      %s93 = sphi 0, %s77
      %s97 = sphi 0, %s97
      %s99 = sphi 0, %s97
      %s100 = sphi 0, %s99
      %s114 = sphi 0, %s100
      %s118 = sphi 0, %s118
      %s120 = sphi 0, %s118
      %s121 = sphi 0, %s120
      %s135 = sphi 0, %s121
      %s139 = sphi 0, %s139
      %s141 = sphi 0, %s139
      %s142 = sphi 0, %s141
      %s156 = sphi 0, %s142
      %s164 = sphi 0, %s166
      %s167 = sphi 0, %s164
      %s168 = sphi 0, %s167
      %s184 = sphi 0, %s168
    $region4: #{tpu_custom_call.1} parent=1 // loop_header_branch
      %24 = sbr.rel (%p22) target = $region8
    $region5: #{tpu_custom_call.1} parent=1 // loop_body
      %s26 = ssub.s32 %s21, 1
      %s27 = ssub.s32 %s21, 2
      %s34 = sadd.s32 1, %s29
      %p35 = scmp.ge.s32.totalorder %s34, 1
      %s36 = scalar_select %p35, 0, %s34
      %s37 = sadd.s32 1, %s28
      %s38 = scalar_select %p35, %s37, %s28
      %p39 = scmp.ge.s32.totalorder %s38, 2
      %s40 = scalar_select %p39, 0, %s38
      %s41 = ssub.s32 %s28, %s40
      %s42 = ssub.s32 %s29, %s36
      %s43 = sor.u32 %s41, %s42
      %p44 = scmp.eq.s32.totalorder %s43, 0
      %s46 = sadd.s32 %s45, 1
      %s47 = scalar_select %p44, %s45, %s46
      %p50 = pneg %p44
      %p51 = scmp.eq.s32.totalorder %s21, 1
      %p52 = por %p50, %p51
      %p53 = scmp.ne.s32.totalorder %s45, %s48
      %p54 = scmp.eq.s32.totalorder %s21, 0
      %p55 = por %p53, %p54
      %p56 = scmp.ne.s32.totalorder %s45, %s48
      %p57 = scmp.eq.s32.totalorder %s26, 1
      %p58 = por %p56, %p57
      %p59 = scmp.ne.s32.totalorder %s48, %s49
      %p60 = scmp.eq.s32.totalorder %s26, 0
      %p61 = por %p59, %p60
      %p62 = scmp.ne.s32.totalorder %s48, %s49
      %p63 = scmp.eq.s32.totalorder %s27, 1
      %p64 = por %p62, %p63
      %p66 = scmp.ne.s32.totalorder %s49, %s65
      %p67 = scmp.eq.s32.totalorder %s27, 0
      %p68 = por %p66, %p67
      %s69 = ssub.s32 %s28, %s40
      %s70 = ssub.s32 %s29, %s36
      %s71 = sor.u32 %s69, %s70
      %p72 = scmp.eq.s32.totalorder %s71, 0
      %s74 = sadd.s32 %s73, 1
      %s75 = scalar_select %p72, %s73, %s74
      %p78 = pneg %p72
      %p79 = scmp.eq.s32.totalorder %s21, 1
      %p80 = por %p78, %p79
      %p81 = scmp.ne.s32.totalorder %s73, %s76
      %p82 = scmp.eq.s32.totalorder %s21, 0
      %p83 = por %p81, %p82
      %p84 = scmp.ne.s32.totalorder %s73, %s76
      %p85 = scmp.eq.s32.totalorder %s26, 1
      %p86 = por %p84, %p85
      %p87 = scmp.ne.s32.totalorder %s76, %s77
      %p88 = scmp.eq.s32.totalorder %s26, 0
      %p89 = por %p87, %p88
      %p90 = scmp.ne.s32.totalorder %s76, %s77
      %p91 = scmp.eq.s32.totalorder %s27, 1
      %p92 = por %p90, %p91
      %p94 = scmp.ne.s32.totalorder %s77, %s93
      %p95 = scmp.eq.s32.totalorder %s27, 0
      %p96 = por %p94, %p95
      %s98 = sadd.s32 %s97, 1
      %p101 = scmp.eq.s32.totalorder %s21, 1
      %p102 = scmp.ne.s32.totalorder %s97, %s99
      %p103 = scmp.eq.s32.totalorder %s21, 0
      %p104 = por %p102, %p103
      %p105 = scmp.ne.s32.totalorder %s97, %s99
      %p106 = scmp.eq.s32.totalorder %s26, 1
      %p107 = por %p105, %p106
      %p108 = scmp.ne.s32.totalorder %s99, %s100
      %p109 = scmp.eq.s32.totalorder %s26, 0
      %p110 = por %p108, %p109
      %p111 = scmp.ne.s32.totalorder %s99, %s100
      %p112 = scmp.eq.s32.totalorder %s27, 1
      %p113 = por %p111, %p112
      %p115 = scmp.ne.s32.totalorder %s100, %s114
      %p116 = scmp.eq.s32.totalorder %s27, 0
      %p117 = por %p115, %p116
      %s119 = sadd.s32 %s118, 1
      %p122 = scmp.eq.s32.totalorder %s21, 1
      %p123 = scmp.ne.s32.totalorder %s118, %s120
      %p124 = scmp.eq.s32.totalorder %s21, 0
      %p125 = por %p123, %p124
      %p126 = scmp.ne.s32.totalorder %s118, %s120
      %p127 = scmp.eq.s32.totalorder %s26, 1
      %p128 = por %p126, %p127
      %p129 = scmp.ne.s32.totalorder %s120, %s121
      %p130 = scmp.eq.s32.totalorder %s26, 0
      %p131 = por %p129, %p130
      %p132 = scmp.ne.s32.totalorder %s120, %s121
      %p133 = scmp.eq.s32.totalorder %s27, 1
      %p134 = por %p132, %p133
      %p136 = scmp.ne.s32.totalorder %s121, %s135
      %p137 = scmp.eq.s32.totalorder %s27, 0
      %p138 = por %p136, %p137
      %s140 = sadd.s32 %s139, 1
      %p143 = scmp.eq.s32.totalorder %s21, 1
      %p144 = scmp.ne.s32.totalorder %s139, %s141
      %p145 = scmp.eq.s32.totalorder %s21, 0
      %p146 = por %p144, %p145
      %p147 = scmp.ne.s32.totalorder %s139, %s141
      %p148 = scmp.eq.s32.totalorder %s26, 1
      %p149 = por %p147, %p148
      %p150 = scmp.ne.s32.totalorder %s141, %s142
      %p151 = scmp.eq.s32.totalorder %s26, 0
      %p152 = por %p150, %p151
      %p153 = scmp.ne.s32.totalorder %s141, %s142
      %p154 = scmp.eq.s32.totalorder %s27, 1
      %p155 = por %p153, %p154
      %p157 = scmp.ne.s32.totalorder %s142, %s156
      %p158 = scmp.eq.s32.totalorder %s27, 0
      %p159 = por %p157, %p158
      %s160 = ssub.s32 %s28, %s40
      %s161 = ssub.s32 %s29, %s36
      %s162 = sor.u32 %s160, %s161
      %p163 = scmp.eq.s32.totalorder %s162, 0
      %s165 = sadd.s32 %s164, 1
      %s166 = scalar_select %p163, %s164, %s165
      %p169 = pneg %p163
      %p170 = scmp.eq.s32.totalorder %s21, 1
      %p171 = por %p169, %p170
      %p172 = scmp.ne.s32.totalorder %s164, %s167
      %p173 = scmp.eq.s32.totalorder %s21, 0
      %p174 = por %p172, %p173
      %p175 = scmp.ne.s32.totalorder %s164, %s167
      %p176 = scmp.eq.s32.totalorder %s26, 1
      %p177 = por %p175, %p176
      %p178 = scmp.ne.s32.totalorder %s167, %s168
      %p179 = scmp.eq.s32.totalorder %s26, 0
      %p180 = por %p178, %p179
      %p181 = scmp.ne.s32.totalorder %s167, %s168
      %p182 = scmp.eq.s32.totalorder %s27, 1
      %p183 = por %p181, %p182
      %p185 = scmp.ne.s32.totalorder %s168, %s184
      %p186 = scmp.eq.s32.totalorder %s27, 0
      %p187 = por %p185, %p186
      %p188 = scmp.le.s32.totalorder 1, %s21
      %p189 = scmp.lt.s32.totalorder %s21, 3
      %p190 = pnand %p188, %p189
      %p191 = pneg %p190
      // Predicated region
      $region9: #{tpu_custom_call.1} parent=5 // pred_check
        _
      $region10: #{tpu_custom_call.1} parent=5 // pred_check_branch
        %193 = sbr.rel (%p190) target = $region12
      $region11: #{tpu_custom_call.1} parent=5 // pred_region
        %s194 = ssub.s32 %s21, 1
        // Predicated region
        $region13: #{tpu_custom_call.1} parent=11 // pred_check
          %p195 = pneg %p110
        $region14: #{tpu_custom_call.1} parent=11 // pred_check_branch
          %197 = sbr.rel (%p195) target = $region16
        $region15: #{tpu_custom_call.1} parent=11 // pred_region
          _
        $region16: #{tpu_custom_call.1} parent=11 // pred_fallthru
          _
        // Predicated region
        $region17: #{tpu_custom_call.1} parent=11 // pred_check
          %p198 = pneg %p131
        $region18: #{tpu_custom_call.1} parent=11 // pred_check_branch
          %200 = sbr.rel (%p198) target = $region20
        $region19: #{tpu_custom_call.1} parent=11 // pred_region
          _
        $region20: #{tpu_custom_call.1} parent=11 // pred_fallthru
          _
        // Predicated region
        $region21: #{tpu_custom_call.1} parent=11 // pred_check
          %p201 = pneg %p152
        $region22: #{tpu_custom_call.1} parent=11 // pred_check_branch
          %203 = sbr.rel (%p201) target = $region24
        $region23: #{tpu_custom_call.1} parent=11 // pred_region
          %s205 = ssub.s32 32, 32
          %206 = vsyncadd [#allocation5], %s205
          %s208 = sshll.u32 %s4, 4
          %s209 = int_to_ptr.vmem [resolvable:$true] %s208
          %211 = dma.vmem_to_smem %s209, 32, [#allocation8], [#allocation5]
        $region24: #{tpu_custom_call.1} parent=11 // pred_fallthru
          _
      $region12: #{tpu_custom_call.1} parent=5 // pred_fallthru
        _
      %p212 = scmp.lt.s32.totalorder %s21, 2
      // Predicated region
      $region25: #{tpu_custom_call.1} parent=5 // pred_check
        %p213 = pneg %p212
      $region26: #{tpu_custom_call.1} parent=5 // pred_check_branch
        %215 = sbr.rel (%p213) target = $region28
      $region27: #{tpu_custom_call.1} parent=5 // pred_region
        // Predicated region
        $region29: #{tpu_custom_call.1} parent=27 // pred_check
          %p216 = pneg %p55
        $region30: #{tpu_custom_call.1} parent=27 // pred_check_branch
          %218 = sbr.rel (%p216) target = $region32
        $region31: #{tpu_custom_call.1} parent=27 // pred_region
          %s219 = sand.u32 %s45, 1
          %s220 = scalar_lea.sflag [#allocation3], %s219
          %s221 = sand.u32 %s45, 1
          %s222 = smul.addr %s221, 8
          %s223 = scalar_lea.vmem [#allocation2], %s222
          %s224 = smul.u32 2, %s29
          %s226 = ssub.s32 128, 128
          %227 = vsyncadd %s220, %s226
          %s228 = smul.addr %s28, 2
          %s229 = sadd.s32 %s224, %s228
          %s230 = smul.addr %s229, 64
          %s231 = scalar_lea.hbm %s0, %s230
          %s233 = sshll.u32 %s223, 4
          %s234 = int_to_ptr.vmem [resolvable:$true] %s233
          %236 = dma.hbm_to_vmem [thread:$0]  %s231, 128, %s234, %s220
        $region32: #{tpu_custom_call.1} parent=27 // pred_fallthru
          _
        // Predicated region
        $region33: #{tpu_custom_call.1} parent=27 // pred_check
          %p237 = pneg %p83
        $region34: #{tpu_custom_call.1} parent=27 // pred_check_branch
          %239 = sbr.rel (%p237) target = $region36
        $region35: #{tpu_custom_call.1} parent=27 // pred_region
          %s240 = sand.u32 %s73, 1
          %s241 = scalar_lea.sflag [#allocation7], %s240
          %s242 = sand.u32 %s73, 1
          %s243 = smul.addr %s242, 8
          %s244 = scalar_lea.vmem [#allocation6], %s243
          %s245 = smul.u32 2, %s29
          %s247 = ssub.s32 128, 128
          %248 = vsyncadd %s241, %s247
          %s249 = smul.addr %s28, 2
          %s250 = sadd.s32 %s245, %s249
          %s251 = smul.addr %s250, 64
          %s252 = scalar_lea.hbm %s1, %s251
          %s254 = sshll.u32 %s244, 4
          %s255 = int_to_ptr.vmem [resolvable:$true] %s254
          %257 = dma.hbm_to_vmem [thread:$0]  %s252, 128, %s255, %s241
        $region36: #{tpu_custom_call.1} parent=27 // pred_fallthru
          _
      $region28: #{tpu_custom_call.1} parent=5 // pred_fallthru
        _
      %p258 = scmp.le.s32.totalorder 1, %s21
      %p259 = scmp.lt.s32.totalorder %s21, 3
      %p260 = pnand %p258, %p259
      %p261 = pneg %p260
      // Predicated region
      $region37: #{tpu_custom_call.1} parent=5 // pred_check
        _
      $region38: #{tpu_custom_call.1} parent=5 // pred_check_branch
        %263 = sbr.rel (%p260) target = $region40
      $region39: #{tpu_custom_call.1} parent=5 // pred_region
        %s264 = ssub.s32 %s21, 1
        %s265 = sand.u32 %s48, 1
        %s266 = scalar_lea.sflag [#allocation3], %s265
        %s267 = sand.u32 %s48, 1
        %s268 = smul.addr %s267, 8
        %s269 = scalar_lea.vmem [#allocation2], %s268
        // Predicated region
        $region41: #{tpu_custom_call.1} parent=39 // pred_check
          %p270 = pneg %p61
        $region42: #{tpu_custom_call.1} parent=39 // pred_check_branch
          %272 = sbr.rel (%p270) target = $region44
        $region43: #{tpu_custom_call.1} parent=39 // pred_region
          %273 = dma.done %s266, 128
        $region44: #{tpu_custom_call.1} parent=39 // pred_fallthru
          _
        %s274 = sand.u32 %s76, 1
        %s275 = scalar_lea.sflag [#allocation7], %s274
        %s276 = sand.u32 %s76, 1
        %s277 = smul.addr %s276, 8
        %s278 = scalar_lea.vmem [#allocation6], %s277
        // Predicated region
        $region45: #{tpu_custom_call.1} parent=39 // pred_check
          %p279 = pneg %p89
        $region46: #{tpu_custom_call.1} parent=39 // pred_check_branch
          %281 = sbr.rel (%p279) target = $region48
        $region47: #{tpu_custom_call.1} parent=39 // pred_region
          %282 = dma.done %s275, 128
        $region48: #{tpu_custom_call.1} parent=39 // pred_fallthru
          _
        // Predicated region
        $region49: #{tpu_custom_call.1} parent=39 // pred_check
          %p283 = pneg %p152
        $region50: #{tpu_custom_call.1} parent=39 // pred_check_branch
          %285 = sbr.rel (%p283) target = $region52
        $region51: #{tpu_custom_call.1} parent=39 // pred_region
          %286 = dma.done [#allocation5], 32
        $region52: #{tpu_custom_call.1} parent=39 // pred_fallthru
          _
        %287 = sfence
        %s288 = sand.u32 %s48, 1
        %s289 = scalar_lea.sflag [#allocation3], %s288
        %s290 = sand.u32 %s48, 1
        %s291 = smul.addr %s290, 8
        %s292 = scalar_lea.vmem [#allocation2], %s291
        %p293 = pneg %p61
        %p294 = pneg %p58
        %s295 = sand.u32 %s76, 1
        %s296 = scalar_lea.sflag [#allocation7], %s295
        %s297 = sand.u32 %s76, 1
        %s298 = smul.addr %s297, 8
        %s299 = scalar_lea.vmem [#allocation6], %s298
        %p300 = pneg %p89
        %p301 = pneg %p86
        %p302 = pneg %p110
        %p303 = pneg %p107
        %p304 = pneg %p131
        %p305 = pneg %p128
        %p306 = pneg %p152
        %p307 = pneg %p149
        %p308 = pneg %p180
        %p309 = pneg %p177
        %s310 = sand.u32 %s167, 1
        %s311 = scalar_lea.sflag [#allocation4], %s310
        %s312 = sand.u32 %s167, 1
        %s313 = smul.addr %s312, 16
        %s314 = scalar_lea.vmem [#allocation9], %s313
        %s315 = smul.u32 2, %s31
        %s316 = smul.u32 2, %s31
        %s317 = smul.u32 2, %s31
        %v318 = vld [vmem:[%s269] sm:$0xff]
        %v319 = vld [vmem:[%s278] sm:$0xff]
        %v320 = vld [vmem:[%s2] sm:$0xf]
        %v321 = vld [vmem:[%s3] sm:$0xf]
        %v323 = vcombine.high %v319, %v319
        %vm324 = vcmask 31744
        %v326 = vsel %vm324, %v321, 0
        %vm328 = vcmask 1043456
        %v329 = vsel %vm328, %v319, 0
        %v331 = vsel %vm328, %v323, 0
        %333 = vmatprep.subr.mxu0 %v331
        %334 = vmatpush1.msra.mxu0 %v329
        %335 = vmatprep.subr.mxu0 0.0
        %336 = vmatpush1.msra.mxu0 0.0
        %337 = vmatprep.subr.mxu0 0.0
        %338 = vmatpush1.msra.mxu0 0.0
        %339 = vmatprep.subr.mxu0 0.0
        %340 = vmatpush1.msra.mxu0 0.0
        %341 = vmatprep.subr.mxu0 0.0
        %342 = vmatpush1.msra.mxu0 0.0
        %343 = vmatprep.subr.mxu0 0.0
        %344 = vmatpush1.msra.mxu0 0.0
        %345 = vmatprep.subr.mxu0 0.0
        %346 = vmatpush1.msra.mxu0 0.0
        %347 = vmatprep.subr.mxu0 0.0
        %348 = vmatpush1.msra.mxu0 0.0
        %349 = vmatprep.subr.mxu0 0.0
        %350 = vmatpush1.msra.mxu0 0.0
        %351 = vmatprep.subr.mxu0 0.0
        %352 = vmatpush1.msra.mxu0 0.0
        %353 = vmatprep.subr.mxu0 0.0
        %354 = vmatpush1.msra.mxu0 0.0
        %355 = vmatprep.subr.mxu0 0.0
        %356 = vmatpush1.msra.mxu0 0.0
        %357 = vmatprep.subr.mxu0 0.0
        %358 = vmatpush1.msra.mxu0 0.0
        %359 = vmatprep.subr.mxu0 0.0
        %360 = vmatpush1.msra.mxu0 0.0
        %361 = vmatprep.subr.mxu0 0.0
        %362 = vmatpush1.msra.mxu0 0.0
        %363 = vmatprep.subr.mxu0 0.0
        %364 = vmatpush1.msra.mxu0 0.0
        %365 = vmatprep.subr.mxu0 0.0
        %366 = vmatpush1.msra.mxu0 0.0
        %367 = vmatprep.subr.mxu0 0.0
        %368 = vmatpush1.msra.mxu0 0.0
        %369 = vmatprep.subr.mxu0 0.0
        %370 = vmatpush1.msra.mxu0 0.0
        %371 = vmatprep.subr.mxu0 0.0
        %372 = vmatpush1.msra.mxu0 0.0
        %373 = vmatprep.subr.mxu0 0.0
        %374 = vmatpush1.msra.mxu0 0.0
        %375 = vmatprep.subr.mxu0 0.0
        %376 = vmatpush1.msra.mxu0 0.0
        %377 = vmatprep.subr.mxu0 0.0
        %378 = vmatpush1.msra.mxu0 0.0
        %379 = vmatprep.subr.mxu0 0.0
        %380 = vmatpush1.msra.mxu0 0.0
        %381 = vmatprep.subr.mxu0 0.0
        %382 = vmatpush1.msra.mxu0 0.0
        %383 = vmatprep.subr.mxu0 0.0
        %384 = vmatpush1.msra.mxu0 0.0
        %385 = vmatprep.subr.mxu0 0.0
        %386 = vmatpush1.msra.mxu0 0.0
        %387 = vmatprep.subr.mxu0 0.0
        %388 = vmatpush1.msra.mxu0 0.0
        %389 = vmatprep.subr.mxu0 0.0
        %390 = vmatpush1.msra.mxu0 0.0
        %391 = vmatprep.subr.mxu0 0.0
        %392 = vmatpush1.msra.mxu0 0.0
        %393 = vmatprep.subr.mxu0 0.0
        %394 = vmatpush1.msra.mxu0 0.0
        %395 = vmatprep.subr.mxu0 0.0
        %396 = vmatpush1.msra.mxu0 0.0
        %397 = vmatprep.mubr.f32.mxu0 0.0
        %398 = vmatmul.mubr.f32.gmra.mrb[0].mxu0 %v326
        %v399 = vpop.f32.mrb[0].mxu0
        %v400 = vadd.f32 0.0, %v399
        %v401 = vpop.f32.mrb[0].mxu0
        %v402 = vadd.f32 0.0, %v401
        %403 = vdwg.mxu0
        %v405 = vcombine.high %v318, %v318
        %v407 = vsel %vm324, %v320, 0
        %v409 = vsel %vm328, %v318, 0
        %v411 = vsel %vm328, %v405, 0
        %413 = vmatprep.subr.mxu0 %v411
        %414 = vmatpush1.msra.mxu0 %v409
        %415 = vmatprep.subr.mxu0 0.0
        %416 = vmatpush1.msra.mxu0 0.0
        %417 = vmatprep.subr.mxu0 0.0
        %418 = vmatpush1.msra.mxu0 0.0
        %419 = vmatprep.subr.mxu0 0.0
        %420 = vmatpush1.msra.mxu0 0.0
        %421 = vmatprep.subr.mxu0 0.0
        %422 = vmatpush1.msra.mxu0 0.0
        %423 = vmatprep.subr.mxu0 0.0
        %424 = vmatpush1.msra.mxu0 0.0
        %425 = vmatprep.subr.mxu0 0.0
        %426 = vmatpush1.msra.mxu0 0.0
        %427 = vmatprep.subr.mxu0 0.0
        %428 = vmatpush1.msra.mxu0 0.0
        %429 = vmatprep.subr.mxu0 0.0
        %430 = vmatpush1.msra.mxu0 0.0
        %431 = vmatprep.subr.mxu0 0.0
        %432 = vmatpush1.msra.mxu0 0.0
        %433 = vmatprep.subr.mxu0 0.0
        %434 = vmatpush1.msra.mxu0 0.0
        %435 = vmatprep.subr.mxu0 0.0
        %436 = vmatpush1.msra.mxu0 0.0
        %437 = vmatprep.subr.mxu0 0.0
        %438 = vmatpush1.msra.mxu0 0.0
        %439 = vmatprep.subr.mxu0 0.0
        %440 = vmatpush1.msra.mxu0 0.0
        %441 = vmatprep.subr.mxu0 0.0
        %442 = vmatpush1.msra.mxu0 0.0
        %443 = vmatprep.subr.mxu0 0.0
        %444 = vmatpush1.msra.mxu0 0.0
        %445 = vmatprep.subr.mxu0 0.0
        %446 = vmatpush1.msra.mxu0 0.0
        %447 = vmatprep.subr.mxu0 0.0
        %448 = vmatpush1.msra.mxu0 0.0
        %449 = vmatprep.subr.mxu0 0.0
        %450 = vmatpush1.msra.mxu0 0.0
        %451 = vmatprep.subr.mxu0 0.0
        %452 = vmatpush1.msra.mxu0 0.0
        %453 = vmatprep.subr.mxu0 0.0
        %454 = vmatpush1.msra.mxu0 0.0
        %455 = vmatprep.subr.mxu0 0.0
        %456 = vmatpush1.msra.mxu0 0.0
        %457 = vmatprep.subr.mxu0 0.0
        %458 = vmatpush1.msra.mxu0 0.0
        %459 = vmatprep.subr.mxu0 0.0
        %460 = vmatpush1.msra.mxu0 0.0
        %461 = vmatprep.subr.mxu0 0.0
        %462 = vmatpush1.msra.mxu0 0.0
        %463 = vmatprep.subr.mxu0 0.0
        %464 = vmatpush1.msra.mxu0 0.0
        %465 = vmatprep.subr.mxu0 0.0
        %466 = vmatpush1.msra.mxu0 0.0
        %467 = vmatprep.subr.mxu0 0.0
        %468 = vmatpush1.msra.mxu0 0.0
        %469 = vmatprep.subr.mxu0 0.0
        %470 = vmatpush1.msra.mxu0 0.0
        %471 = vmatprep.subr.mxu0 0.0
        %472 = vmatpush1.msra.mxu0 0.0
        %473 = vmatprep.subr.mxu0 0.0
        %474 = vmatpush1.msra.mxu0 0.0
        %475 = vmatprep.subr.mxu0 0.0
        %476 = vmatpush1.msra.mxu0 0.0
        %477 = vmatprep.mubr.f32.mxu0 0.0
        %478 = vmatmul.mubr.f32.gmra.mrb[0].mxu0 %v407
        %v479 = vpop.f32.mrb[0].mxu0
        %v480 = vadd.f32 %v400, %v479
        %v481 = vpop.f32.mrb[0].mxu0
        %v482 = vadd.f32 %v402, %v481
        %483 = vdwg.mxu0
        %v484 = vsel %vm328, %v480, 0.0
        %v485 = vrot.slane %v484, 4
        %v486 = vadd.f32 %v484, %v485
        %v487 = vrot.slane %v486, 2
        %v488 = vadd.f32 %v486, %v487
        %v489 = vrot.slane %v488, 1
        %v490 = vadd.f32 %v488, %v489
        %v491 = vsel %vm328, %v482, 0.0
        %v492 = vrot.slane %v491, 4
        %v493 = vadd.f32 %v491, %v492
        %v494 = vrot.slane %v493, 2
        %v495 = vadd.f32 %v493, %v494
        %v496 = vrot.slane %v495, 1
        %v497 = vadd.f32 %v495, %v496
        %v498 = vrcp.pop 4.0
        %v499 = vmul.f32 %v490, %v498
        %v500 = vmul.f32 %v497, %v498
        %v501 = vsel %vm328, %v480, -inf
        %v502 = vrot.slane %v501, 4
        %v503 = vmax.f32 %v501, %v502
        %v504 = vrot.slane %v503, 2
        %v505 = vmax.f32 %v503, %v504
        %v506 = vrot.slane %v505, 1
        %v507 = vmax.f32 %v505, %v506
        %v508 = vsel %vm328, %v482, -inf
        %v509 = vrot.slane %v508, 4
        %v510 = vmax.f32 %v508, %v509
        %v511 = vrot.slane %v510, 2
        %v512 = vmax.f32 %v510, %v511
        %v513 = vrot.slane %v512, 1
        %v514 = vmax.f32 %v512, %v513
        %s515 = sld [smem:[#allocation8]]
        %v516 = vstv %s515
        %v517 = vmul.f32 %v516, %v499
        %v518 = vmul.f32 %v516, %v500
        %s519 = sld [smem:[#allocation8 + $0x1]]
        %v520 = vstv %s519
        %v521 = vmul.f32 %v520, %v507
        %v522 = vmul.f32 %v520, %v514
        %v523 = vadd.f32 %v517, %v521
        %v524 = vadd.f32 %v518, %v522
        %v525 = vxor.u32 %v523, 2147483648
        %v526 = vxor.u32 %v524, 2147483648
        %v527 = vmul.f32 %v525, 1.442695
        %v528 = vpow.pop %v527
        %v529 = vmul.f32 %v526, 1.442695
        %v530 = vpow.pop %v529
        %v531 = vadd.f32 %v528, 1.0
        %v532 = vadd.f32 %v530, 1.0
        %v533 = vrcp.pop %v531
        %v534 = vmul.f32 1.0, %v533
        %v535 = vrcp.pop %v532
        %v536 = vmul.f32 1.0, %v535
        %s537 = sld [smem:[#allocation8 + $0x80]]
        %v538 = vstv %s537
        %v539 = vmul.f32 %v538, %v499
        %v540 = vmul.f32 %v538, %v500
        %s541 = sld [smem:[#allocation8 + $0x81]]
        %v542 = vstv %s541
        %v543 = vmul.f32 %v542, %v507
        %v544 = vmul.f32 %v542, %v514
        %v545 = vadd.f32 %v539, %v543
        %v546 = vadd.f32 %v540, %v544
        %v547 = vxor.u32 %v545, 2147483648
        %v548 = vxor.u32 %v546, 2147483648
        %v549 = vmul.f32 %v547, 1.442695
        %v550 = vpow.pop %v549
        %v551 = vmul.f32 %v548, 1.442695
        %v552 = vpow.pop %v551
        %v553 = vadd.f32 %v550, 1.0
        %v554 = vadd.f32 %v552, 1.0
        %v555 = vrcp.pop %v553
        %v556 = vmul.f32 1.0, %v555
        %v557 = vrcp.pop %v554
        %v558 = vmul.f32 1.0, %v557
        %v561 = vcombine.low %v534, %v536
        %v563 = vmul.f32 %v318, %v561
        %v565 = vcombine.high %v563, %v563
        %567 = vst [vmem:[%s314] sm:$0xf] %v563
        %568 = vst [vmem:[%s314 + $0x8] sm:$0xf] %v565
        %v571 = vcombine.low %v556, %v558
        %v573 = vmul.f32 %v319, %v571
        %v575 = vcombine.low %v573, %v573
        %577 = vst [vmem:[%s314] sm:$0xf0] %v575
        %578 = vst [vmem:[%s314 + $0x8] sm:$0xf0] %v573
        %s579 = sand.u32 %s167, 1
        %s580 = scalar_lea.sflag [#allocation4], %s579
        %s581 = sand.u32 %s167, 1
        %s582 = smul.addr %s581, 16
        %s583 = scalar_lea.vmem [#allocation9], %s582
        // Predicated region
        $region53: #{tpu_custom_call.1} parent=39 // pred_check
          %p584 = pneg %p177
        $region54: #{tpu_custom_call.1} parent=39 // pred_check_branch
          %586 = sbr.rel (%p584) target = $region56
        $region55: #{tpu_custom_call.1} parent=39 // pred_region
          %s587 = smul.u32 2, %s31
          %s589 = ssub.s32 256, 256
          %590 = vsyncadd %s580, %s589
          %s591 = smul.addr %s30, 2
          %s592 = sadd.s32 %s587, %s591
          %s593 = smul.addr %s592, 128
          %s594 = scalar_lea.hbm %s5, %s593
          %s596 = sshll.u32 %s583, 4
          %s597 = int_to_ptr.vmem [resolvable:$true] %s596
          %599 = dma.vmem_to_hbm [thread:$0]  %s597, 256, %s594, %s580
        $region56: #{tpu_custom_call.1} parent=39 // pred_fallthru
          _
      $region40: #{tpu_custom_call.1} parent=5 // pred_fallthru
        _
      %p600 = scmp.le.s32.totalorder 2, %s21
      // Predicated region
      $region57: #{tpu_custom_call.1} parent=5 // pred_check
        %p601 = pneg %p600
      $region58: #{tpu_custom_call.1} parent=5 // pred_check_branch
        %603 = sbr.rel (%p601) target = $region60
      $region59: #{tpu_custom_call.1} parent=5 // pred_region
        %s604 = ssub.s32 %s21, 2
        // Predicated region
        $region61: #{tpu_custom_call.1} parent=59 // pred_check
          %p605 = pneg %p183
        $region62: #{tpu_custom_call.1} parent=59 // pred_check_branch
          %607 = sbr.rel (%p605) target = $region64
        $region63: #{tpu_custom_call.1} parent=59 // pred_region
          %s608 = sand.u32 %s168, 1
          %s609 = scalar_lea.sflag [#allocation4], %s608
          %s610 = sand.u32 %s168, 1
          %s611 = smul.addr %s610, 16
          %s612 = scalar_lea.vmem [#allocation9], %s611
          %613 = dma.done %s609, 256
        $region64: #{tpu_custom_call.1} parent=59 // pred_fallthru
          _
      $region60: #{tpu_custom_call.1} parent=5 // pred_fallthru
        _
    $region6: #{tpu_custom_call.1} parent=1 // loop_footer
      %s25 = sadd.s32 1, %s21
    $region7: #{tpu_custom_call.1} parent=1 // loop_footer_branch
      %20 = sbr.rel target = $region3
    $region8: #{tpu_custom_call.1} parent=1 // loop_exit
      _
    %614 = vsyncpa [#allocation3], 1
    %s615 = scalar_lea.sflag [#allocation3], 1
    %616 = vsyncpa %s615, 1
    %617 = vsyncpa [#allocation7], 1
    %s618 = scalar_lea.sflag [#allocation7], 1
    %619 = vsyncpa %s618, 1
    %620 = vsyncpa [#allocation4], 1
    %s621 = scalar_lea.sflag [#allocation4], 1
    %622 = vsyncpa %s621, 1
    %623 = vsyncpa [#allocation5], 1
    %s624 = scalar_lea.sflag [#allocation5], 1
    %625 = vsyncpa %s624, 1

</llo_original>
